<compile_context>
chip_gen: v7x
topology: tpu7x:2x2x1
jax: 0.10.0
libtpu: 0.0.40
codegen_flags: <defaults>
</compile_context>

<pallas_src>
from collections import namedtuple

import jax
import jax.numpy as jnp
from jax.experimental import pallas as pl
from jax.experimental.pallas import tpu as pltpu

WeightedLoss = namedtuple("WeightedLoss", ["weight", "name"])

_LANE = 128
_SUBLANE = 8


def _round_up(x, m):
    return (x + m - 1) // m * m


def _pick_rows_per_tile(n_rows, num_classes):
    """Rows (of 128 pixels) per tile: ~1 MiB f32 working slab, multiple of 8."""
    target_bytes = 1 << 20
    s = target_bytes // max(1, num_classes * _LANE * 4)
    s = max(_SUBLANE, (s // _SUBLANE) * _SUBLANE)
    if n_rows <= _SUBLANE:
        return n_rows                      # block dim == full array dim (allowed)
    return min(s, (n_rows // _SUBLANE) * _SUBLANE)


def _make_kernel(hw_valid, rows_per_tile, tiles_per_half, exact):
    """Kernel over one (batch, pixel-half, row-block) grid step.

    logits_ref: (1, C, S, 128)  VMEM  (classes on leading axis, pixels dense)
    labels_ref: (1, 1, S, 128)  VMEM  (native integer dtype)
    ce_ref    : (1, 1, A, 128)  f32   output-resident per-lane CE partial sums
    mse_ref   : (1, 1, A, 128)  f32   output-resident per-lane sq-err partial sums
    """
    s = rows_per_tile
    tile_pix = s * _LANE

    def fold(x):
        """(S,128) -> (min(S,8),128): sublane-aligned full-vreg VPU adds."""
        if s <= _SUBLANE:
            return x
        acc = x[0:_SUBLANE, :]
        for i in range(1, s // _SUBLANE):
            acc = acc + x[i * _SUBLANE:(i + 1) * _SUBLANE, :]
        return acc

    def kernel(logits_ref, labels_ref, ce_ref, mse_ref):
        ti = pl.program_id(2)

        @pl.when(ti == 0)
        def _():
            ce_ref[...] = jnp.zeros_like(ce_ref)
            mse_ref[...] = jnp.zeros_like(mse_ref)

        # logical row-block index (unclamped; the data index_map clamps it)
        blk = pl.program_id(1) * tiles_per_half + ti

        def accumulate(masked):
            logits = logits_ref[0].astype(jnp.float32)        # (C, S, 128)
            labels = labels_ref[0].astype(jnp.int32)          # (1, S, 128)

            if masked:
                row = jax.lax.broadcasted_iota(jnp.int32, (s, _LANE), 0)
                lane = jax.lax.broadcasted_iota(jnp.int32, (s, _LANE), 1)
                pix = (blk * s + row) * _LANE + lane
                valid = pix < hw_valid                        # (S, 128) bool
                # Sanitize: undefined pad data must never reach exp/log.
                logits = jnp.where(valid[None], logits, 0.0)

            # Numerically stable softmax; exponentials computed exactly once.
            m = jnp.max(logits, axis=0)                       # (S, 128)
            e = jnp.exp(logits - m[None])                     # (C, S, 128)  EUP
            se = jnp.sum(e, axis=0)                           # (S, 128)
            lse = m + jnp.log(se)                             # (S, 128)
            inv_se = 1.0 / se                                 # exact
            probs = e * inv_se[None]                          # (C, S, 128)

            classes = jax.lax.broadcasted_iota(jnp.int32, logits.shape, 0)
            onehot = (classes == labels).astype(jnp.float32)  # (C, S, 128)

            logit_lab = jnp.sum(onehot * logits, axis=0)      # (S, 128)
            ce_part = lse - logit_lab                         # per-pixel CE

            d = probs - onehot
            mse_part = jnp.sum(d * d, axis=0)                 # per-pixel sq-err

            if masked:
                ce_part = jnp.where(valid, ce_part, 0.0)
                mse_part = jnp.where(valid, mse_part, 0.0)

            ce_ref[...] += fold(ce_part)[None, None]
            mse_ref[...] += fold(mse_part)[None, None]

        if exact:
            accumulate(False)
        else:
            needs_mask = (blk + 1) * tile_pix > hw_valid

            @pl.when(jnp.logical_not(needs_mask))
            def _():
                accumulate(False)

            @pl.when(needs_mask)
            def _():
                accumulate(True)

    return kernel


@jax.jit
def _base_losses(net_output, labels):
    """Returns (ce_mean, mse_mean) for NCHW logits and integer labels."""
    b, c, h, w = net_output.shape
    hw = h * w

    logits = net_output.reshape(b, c, hw)                     # free reshape of NCHW
    lab = labels.reshape(b, -1)
    if not jnp.issubdtype(lab.dtype, jnp.integer):
        lab = lab.astype(jnp.int32)
    lab = lab.reshape(b, 1, hw)

    # Pad only to a 128 multiple (usually a no-op; no full tile-sized pad copy).
    hw128 = _round_up(hw, _LANE)
    if hw128 != hw:
        logits = jnp.pad(logits, ((0, 0), (0, 0), (0, hw128 - hw)))
        lab = jnp.pad(lab, ((0, 0), (0, 0), (0, hw128 - hw)))
    n_rows = hw128 // _LANE

    # Repack pixels onto sublanes: fully dense vregs even for tiny C.
    logits = logits.reshape(b, c, n_rows, _LANE)
    lab = lab.reshape(b, 1, n_rows, _LANE)

    s = _pick_rows_per_tile(n_rows, c)
    n_row_blocks = pl.cdiv(n_rows, s)
    tiles_per_half = pl.cdiv(n_row_blocks, 2)   # v7x megacore: 2 parallel pixel halves
    last_blk = n_row_blocks - 1
    acc_rows = min(s, _SUBLANE)

    # Every tile fully valid and no clamped duplicate tiles -> skip masking entirely.
    exact = (hw == hw128) and (n_rows % s == 0) and (n_row_blocks == 2 * tiles_per_half)

    def data_map(bi, hi, ti):
        blk = jnp.minimum(hi * tiles_per_half + ti, last_blk)  # clamp keeps DMA in-bounds
        return (bi, 0, blk, 0)

    def out_map(bi, hi, ti):
        return (bi, hi, 0, 0)

    kernel = _make_kernel(hw, s, tiles_per_half, exact)

    ce_parts, mse_parts = pl.pallas_call(
        kernel,
        out_shape=(
            jax.ShapeDtypeStruct((b, 2, acc_rows, _LANE), jnp.float32),
            jax.ShapeDtypeStruct((b, 2, acc_rows, _LANE), jnp.float32),
        ),
        grid_spec=pltpu.PrefetchScalarGridSpec(
            num_scalar_prefetch=0,
            grid=(b, 2, tiles_per_half),
            in_specs=[
                pl.BlockSpec((1, c, s, _LANE), data_map),
                pl.BlockSpec((1, 1, s, _LANE), data_map),
            ],
            out_specs=[
                pl.BlockSpec((1, 1, acc_rows, _LANE), out_map),
                pl.BlockSpec((1, 1, acc_rows, _LANE), out_map),
            ],
        ),
        compiler_params=pltpu.CompilerParams(
            dimension_semantics=("parallel", "parallel", "arbitrary"),
        ),
    )(logits, lab)

    n_pix = jnp.float32(b * hw)
    ce_mean = jnp.sum(ce_parts, dtype=jnp.float32) / n_pix
    mse_mean = jnp.sum(mse_parts, dtype=jnp.float32) / (n_pix * jnp.float32(c))
    return ce_mean, mse_mean


class MultiTaskLoss:
    """JAX/Pallas port of the PyTorch MultiTaskLoss container."""

    # TODO(synk): arbitrary user-supplied `loss.f` callables are not supported;
    # the container is instantiated with the fused cross-entropy / MSE kernel.
    def __init__(self, weighted_losses):
        self.losses = weighted_losses

    def __call__(self, net_output, labels, **kwargs):
        ce_mean, mse_mean = _base_losses(net_output, labels)
        by_name = {"cross_entropy": ce_mean, "mse": mse_mean}

        accumulator = 0
        for loss in self.losses:
            if loss.weight:  # zero-weight losses are skipped, as in PyTorch
                accumulator += loss.weight * by_name[loss.name]
        return accumulator


if __name__ == "__main__":
    key = jax.random.PRNGKey(0)
    B, C, H, W = 2, 4, 16, 16

    k1, k2 = jax.random.split(key)
    net_output = jax.random.normal(k1, (B, C, H, W), dtype=jnp.float32)
    labels = jax.random.randint(k2, (B, H, W), 0, C, dtype=jnp.int32)

    weighted_losses = [
        WeightedLoss(weight=1.0, name="cross_entropy"),
        WeightedLoss(weight=0.5, name="mse"),
        WeightedLoss(weight=0.0, name="cross_entropy"),  # skipped (falsy weight)
    ]
    criterion = MultiTaskLoss(weighted_losses)

    out = jax.block_until_ready(criterion(net_output, labels))

    # pure-JAX reference check
    logits = jnp.transpose(net_output, (0, 2, 3, 1)).reshape(-1, C)
    lab = labels.reshape(-1)
    logp = jax.nn.log_softmax(logits, axis=-1)
    ce_ref = -jnp.mean(logp[jnp.arange(lab.shape[0]), lab])
    onehot = jax.nn.one_hot(lab, C, dtype=jnp.float32)
    mse_ref = jnp.mean((jax.nn.softmax(logits, axis=-1) - onehot) ** 2)
    ref = 1.0 * ce_ref + 0.5 * mse_ref
    assert jnp.allclose(out, ref, rtol=1e-5, atol=1e-5), (out, ref)

    print("KERNEL_OK")
</pallas_src>

<mosaic_0001>
module attributes {stable_mosaic.version = 11 : i64} {
  func.func @kernel(%arg0: i32, %arg1: i32, %arg2: i32, %arg3: memref<1x4x2x128xf32, #tpu.memory_space<vmem>>, %arg4: memref<1x1x2x128xi32, #tpu.memory_space<vmem>>, %arg5: memref<1x1x2x128xf32, #tpu.memory_space<vmem>>, %arg6: memref<1x1x2x128xf32, #tpu.memory_space<vmem>>) attributes {dimension_semantics = [#tpu.dimension_semantics<parallel>, #tpu.dimension_semantics<parallel>, #tpu.dimension_semantics<arbitrary>], iteration_bounds = array<i64: 2, 2, 1>, scalar_prefetch = 0 : i64, scratch_operands = 0 : i64, tpu.core_type = #tpu.core_type<tc>, window_params = [{transform_indices = @transform_0, window_bounds = array<i64: 1, 4, 2, 128>}, {transform_indices = @transform_1, window_bounds = array<i64: 1, 1, 2, 128>}, {transform_indices = @transform_2, window_bounds = array<i64: 1, 1, 2, 128>}, {transform_indices = @transform_3, window_bounds = array<i64: 1, 1, 2, 128>}]} {
    %c0_i32 = arith.constant 0 : i32
    %0 = arith.cmpi eq, %arg2, %c0_i32 : i32
    %1 = arith.extui %0 : i1 to i32
    %c0_i32_0 = arith.constant 0 : i32
    %2 = arith.cmpi ne, %1, %c0_i32_0 : i32
    scf.if %2 {
      %cst = arith.constant 0.000000e+00 : f32
      %13 = vector.broadcast %cst : f32 to vector<1x1x2x128xf32>
      %c0 = arith.constant 0 : index
      %c0_5 = arith.constant 0 : index
      %c0_6 = arith.constant 0 : index
      %c0_7 = arith.constant 0 : index
      %14 = vector.load %arg5[%c0, %c0_5, %c0_6, %c0_7] : memref<1x1x2x128xf32, #tpu.memory_space<vmem>>, vector<1x1x2x128xf32>
      tpu.vector_store %arg5[%c0, %c0_5, %c0_6, %c0_7], %13 {strides = array<i32>} : memref<1x1x2x128xf32, #tpu.memory_space<vmem>>, vector<1x1x2x128xf32>,
      %cst_8 = arith.constant 0.000000e+00 : f32
      %15 = vector.broadcast %cst_8 : f32 to vector<1x1x2x128xf32>
      %c0_9 = arith.constant 0 : index
      %c0_10 = arith.constant 0 : index
      %c0_11 = arith.constant 0 : index
      %c0_12 = arith.constant 0 : index
      %16 = vector.load %arg6[%c0_9, %c0_10, %c0_11, %c0_12] : memref<1x1x2x128xf32, #tpu.memory_space<vmem>>, vector<1x1x2x128xf32>
      tpu.vector_store %arg6[%c0_9, %c0_10, %c0_11, %c0_12], %15 {strides = array<i32>} : memref<1x1x2x128xf32, #tpu.memory_space<vmem>>, vector<1x1x2x128xf32>,
    } else {
    }
    %c1_i32 = arith.constant 1 : i32
    %3 = arith.muli %arg1, %c1_i32 : i32
    %4 = arith.addi %3, %arg2 : i32
    %c1_i32_1 = arith.constant 1 : i32
    %5 = arith.addi %4, %c1_i32_1 : i32
    %c256_i32 = arith.constant 256 : i32
    %6 = arith.muli %5, %c256_i32 : i32
    %c256_i32_2 = arith.constant 256 : i32
    %7 = arith.cmpi sgt, %6, %c256_i32_2 : i32
    %true = arith.constant true
    %8 = arith.xori %7, %true : i1
    %9 = arith.extui %8 : i1 to i32
    %c0_i32_3 = arith.constant 0 : i32
    %10 = arith.cmpi ne, %9, %c0_i32_3 : i32
    scf.if %10 {
      %c0 = arith.constant 0 : index
      %c0_5 = arith.constant 0 : index
      %c0_6 = arith.constant 0 : index
      %c0_7 = arith.constant 0 : index
      %13 = vector.load %arg3[%c0, %c0_5, %c0_6, %c0_7] : memref<1x4x2x128xf32, #tpu.memory_space<vmem>>, vector<1x4x2x128xf32>
      %14 = vector.shape_cast %13 : vector<1x4x2x128xf32> to vector<4x2x128xf32>
      %c0_8 = arith.constant 0 : index
      %c0_9 = arith.constant 0 : index
      %c0_10 = arith.constant 0 : index
      %c0_11 = arith.constant 0 : index
      %15 = vector.load %arg4[%c0_8, %c0_9, %c0_10, %c0_11] : memref<1x1x2x128xi32, #tpu.memory_space<vmem>>, vector<1x1x2x128xi32>
      %16 = vector.shape_cast %15 : vector<1x1x2x128xi32> to vector<1x2x128xi32>
      %cst = arith.constant dense<0xFF800000> : vector<2x128xf32>
      %17 = vector.multi_reduction <maximumf>, %14, %cst [0] : vector<4x2x128xf32> to vector<2x128xf32>
      %18 = vector.shape_cast %17 : vector<2x128xf32> to vector<1x2x128xf32>
      %19 = vector.broadcast %18 : vector<1x2x128xf32> to vector<4x2x128xf32>
      %20 = arith.subf %14, %19 : vector<4x2x128xf32>
      %21 = math.exp %20 : vector<4x2x128xf32>
      %cst_12 = arith.constant dense<0.000000e+00> : vector<2x128xf32>
      %22 = vector.multi_reduction <add>, %21, %cst_12 [0] : vector<4x2x128xf32> to vector<2x128xf32>
      %23 = math.log %22 : vector<2x128xf32>
      %24 = arith.addf %17, %23 : vector<2x128xf32>
      %cst_13 = arith.constant 1.000000e+00 : f32
      %25 = vector.broadcast %cst_13 : f32 to vector<2x128xf32>
      %26 = arith.divf %25, %22 : vector<2x128xf32>
      %27 = vector.shape_cast %26 : vector<2x128xf32> to vector<1x2x128xf32>
      %28 = vector.broadcast %27 : vector<1x2x128xf32> to vector<4x2x128xf32>
      %29 = arith.mulf %21, %28 : vector<4x2x128xf32>
      %30 = tpu.iota {dimensions = array<i32: 0>} : vector<4x2x128xi32>
      %31 = vector.broadcast %16 : vector<1x2x128xi32> to vector<4x2x128xi32>
      %32 = arith.cmpi eq, %30, %31 : vector<4x2x128xi32>
      %33 = arith.extui %32 : vector<4x2x128xi1> to vector<4x2x128xi32>
      %34 = arith.sitofp %33 : vector<4x2x128xi32> to vector<4x2x128xf32>
      %35 = arith.mulf %34, %14 : vector<4x2x128xf32>
      %cst_14 = arith.constant dense<0.000000e+00> : vector<2x128xf32>
      %36 = vector.multi_reduction <add>, %35, %cst_14 [0] : vector<4x2x128xf32> to vector<2x128xf32>
      %37 = arith.subf %24, %36 : vector<2x128xf32>
      %38 = arith.subf %29, %34 : vector<4x2x128xf32>
      %39 = arith.mulf %38, %38 : vector<4x2x128xf32>
      %cst_15 = arith.constant dense<0.000000e+00> : vector<2x128xf32>
      %40 = vector.multi_reduction <add>, %39, %cst_15 [0] : vector<4x2x128xf32> to vector<2x128xf32>
      %c0_16 = arith.constant 0 : index
      %c0_17 = arith.constant 0 : index
      %c0_18 = arith.constant 0 : index
      %c0_19 = arith.constant 0 : index
      %41 = vector.load %arg5[%c0_16, %c0_17, %c0_18, %c0_19] : memref<1x1x2x128xf32, #tpu.memory_space<vmem>>, vector<1x1x2x128xf32>
      %42 = vector.shape_cast %37 : vector<2x128xf32> to vector<1x1x2x128xf32>
      %43 = arith.addf %41, %42 : vector<1x1x2x128xf32>
      %c0_20 = arith.constant 0 : index
      %c0_21 = arith.constant 0 : index
      %c0_22 = arith.constant 0 : index
      %c0_23 = arith.constant 0 : index
      %44 = vector.load %arg5[%c0_20, %c0_21, %c0_22, %c0_23] : memref<1x1x2x128xf32, #tpu.memory_space<vmem>>, vector<1x1x2x128xf32>
      tpu.vector_store %arg5[%c0_20, %c0_21, %c0_22, %c0_23], %43 {strides = array<i32>} : memref<1x1x2x128xf32, #tpu.memory_space<vmem>>, vector<1x1x2x128xf32>,
      %c0_24 = arith.constant 0 : index
      %c0_25 = arith.constant 0 : index
      %c0_26 = arith.constant 0 : index
      %c0_27 = arith.constant 0 : index
      %45 = vector.load %arg6[%c0_24, %c0_25, %c0_26, %c0_27] : memref<1x1x2x128xf32, #tpu.memory_space<vmem>>, vector<1x1x2x128xf32>
      %46 = vector.shape_cast %40 : vector<2x128xf32> to vector<1x1x2x128xf32>
      %47 = arith.addf %45, %46 : vector<1x1x2x128xf32>
      %c0_28 = arith.constant 0 : index
      %c0_29 = arith.constant 0 : index
      %c0_30 = arith.constant 0 : index
      %c0_31 = arith.constant 0 : index
      %48 = vector.load %arg6[%c0_28, %c0_29, %c0_30, %c0_31] : memref<1x1x2x128xf32, #tpu.memory_space<vmem>>, vector<1x1x2x128xf32>
      tpu.vector_store %arg6[%c0_28, %c0_29, %c0_30, %c0_31], %47 {strides = array<i32>} : memref<1x1x2x128xf32, #tpu.memory_space<vmem>>, vector<1x1x2x128xf32>,
    } else {
    }
    %11 = arith.extui %7 : i1 to i32
    %c0_i32_4 = arith.constant 0 : i32
    %12 = arith.cmpi ne, %11, %c0_i32_4 : i32
    scf.if %12 {
      %c0 = arith.constant 0 : index
      %c0_5 = arith.constant 0 : index
      %c0_6 = arith.constant 0 : index
      %c0_7 = arith.constant 0 : index
      %13 = vector.load %arg3[%c0, %c0_5, %c0_6, %c0_7] : memref<1x4x2x128xf32, #tpu.memory_space<vmem>>, vector<1x4x2x128xf32>
      %14 = vector.shape_cast %13 : vector<1x4x2x128xf32> to vector<4x2x128xf32>
      %c0_8 = arith.constant 0 : index
      %c0_9 = arith.constant 0 : index
      %c0_10 = arith.constant 0 : index
      %c0_11 = arith.constant 0 : index
      %15 = vector.load %arg4[%c0_8, %c0_9, %c0_10, %c0_11] : memref<1x1x2x128xi32, #tpu.memory_space<vmem>>, vector<1x1x2x128xi32>
      %16 = vector.shape_cast %15 : vector<1x1x2x128xi32> to vector<1x2x128xi32>
      %17 = tpu.iota {dimensions = array<i32: 0>} : vector<2x128xi32>
      %18 = tpu.iota {dimensions = array<i32: 1>} : vector<2x128xi32>
      %c2_i32 = arith.constant 2 : i32
      %19 = arith.muli %4, %c2_i32 : i32
      %20 = vector.broadcast %19 : i32 to vector<2x128xi32>
      %21 = arith.addi %20, %17 : vector<2x128xi32>
      %c128_i32 = arith.constant 128 : i32
      %22 = vector.broadcast %c128_i32 : i32 to vector<2x128xi32>
      %23 = arith.muli %21, %22 : vector<2x128xi32>
      %24 = arith.addi %23, %18 : vector<2x128xi32>
      %c256_i32_12 = arith.constant 256 : i32
      %25 = vector.broadcast %c256_i32_12 : i32 to vector<2x128xi32>
      %26 = arith.cmpi slt, %24, %25 : vector<2x128xi32>
      %27 = vector.shape_cast %26 : vector<2x128xi1> to vector<1x2x128xi1>
      %cst = arith.constant 0.000000e+00 : f32
      %28 = vector.shape_cast %27 : vector<1x2x128xi1> to vector<1x2x128xi1>
      %29 = vector.broadcast %28 : vector<1x2x128xi1> to vector<4x2x128xi1>
      %30 = vector.broadcast %cst : f32 to vector<4x2x128xf32>
      %31 = arith.select %29, %14, %30 : vector<4x2x128xi1>, vector<4x2x128xf32>
      %cst_13 = arith.constant dense<0xFF800000> : vector<2x128xf32>
      %32 = vector.multi_reduction <maximumf>, %31, %cst_13 [0] : vector<4x2x128xf32> to vector<2x128xf32>
      %33 = vector.shape_cast %32 : vector<2x128xf32> to vector<1x2x128xf32>
      %34 = vector.broadcast %33 : vector<1x2x128xf32> to vector<4x2x128xf32>
      %35 = arith.subf %31, %34 : vector<4x2x128xf32>
      %36 = math.exp %35 : vector<4x2x128xf32>
      %cst_14 = arith.constant dense<0.000000e+00> : vector<2x128xf32>
      %37 = vector.multi_reduction <add>, %36, %cst_14 [0] : vector<4x2x128xf32> to vector<2x128xf32>
      %38 = math.log %37 : vector<2x128xf32>
      %39 = arith.addf %32, %38 : vector<2x128xf32>
      %cst_15 = arith.constant 1.000000e+00 : f32
      %40 = vector.broadcast %cst_15 : f32 to vector<2x128xf32>
      %41 = arith.divf %40, %37 : vector<2x128xf32>
      %42 = vector.shape_cast %41 : vector<2x128xf32> to vector<1x2x128xf32>
      %43 = vector.broadcast %42 : vector<1x2x128xf32> to vector<4x2x128xf32>
      %44 = arith.mulf %36, %43 : vector<4x2x128xf32>
      %45 = tpu.iota {dimensions = array<i32: 0>} : vector<4x2x128xi32>
      %46 = vector.broadcast %16 : vector<1x2x128xi32> to vector<4x2x128xi32>
      %47 = arith.cmpi eq, %45, %46 : vector<4x2x128xi32>
      %48 = arith.extui %47 : vector<4x2x128xi1> to vector<4x2x128xi32>
      %49 = arith.sitofp %48 : vector<4x2x128xi32> to vector<4x2x128xf32>
      %50 = arith.mulf %49, %31 : vector<4x2x128xf32>
      %cst_16 = arith.constant dense<0.000000e+00> : vector<2x128xf32>
      %51 = vector.multi_reduction <add>, %50, %cst_16 [0] : vector<4x2x128xf32> to vector<2x128xf32>
      %52 = arith.subf %39, %51 : vector<2x128xf32>
      %53 = arith.subf %44, %49 : vector<4x2x128xf32>
      %54 = arith.mulf %53, %53 : vector<4x2x128xf32>
      %cst_17 = arith.constant dense<0.000000e+00> : vector<2x128xf32>
      %55 = vector.multi_reduction <add>, %54, %cst_17 [0] : vector<4x2x128xf32> to vector<2x128xf32>
      %cst_18 = arith.constant 0.000000e+00 : f32
      %56 = vector.broadcast %cst_18 : f32 to vector<2x128xf32>
      %57 = arith.select %26, %52, %56 : vector<2x128xi1>, vector<2x128xf32>
      %cst_19 = arith.constant 0.000000e+00 : f32
      %58 = vector.broadcast %cst_19 : f32 to vector<2x128xf32>
      %59 = arith.select %26, %55, %58 : vector<2x128xi1>, vector<2x128xf32>
      %c0_20 = arith.constant 0 : index
      %c0_21 = arith.constant 0 : index
      %c0_22 = arith.constant 0 : index
      %c0_23 = arith.constant 0 : index
      %60 = vector.load %arg5[%c0_20, %c0_21, %c0_22, %c0_23] : memref<1x1x2x128xf32, #tpu.memory_space<vmem>>, vector<1x1x2x128xf32>
      %61 = vector.shape_cast %57 : vector<2x128xf32> to vector<1x1x2x128xf32>
      %62 = arith.addf %60, %61 : vector<1x1x2x128xf32>
      %c0_24 = arith.constant 0 : index
      %c0_25 = arith.constant 0 : index
      %c0_26 = arith.constant 0 : index
      %c0_27 = arith.constant 0 : index
      %63 = vector.load %arg5[%c0_24, %c0_25, %c0_26, %c0_27] : memref<1x1x2x128xf32, #tpu.memory_space<vmem>>, vector<1x1x2x128xf32>
      tpu.vector_store %arg5[%c0_24, %c0_25, %c0_26, %c0_27], %62 {strides = array<i32>} : memref<1x1x2x128xf32, #tpu.memory_space<vmem>>, vector<1x1x2x128xf32>,
      %c0_28 = arith.constant 0 : index
      %c0_29 = arith.constant 0 : index
      %c0_30 = arith.constant 0 : index
      %c0_31 = arith.constant 0 : index
      %64 = vector.load %arg6[%c0_28, %c0_29, %c0_30, %c0_31] : memref<1x1x2x128xf32, #tpu.memory_space<vmem>>, vector<1x1x2x128xf32>
      %65 = vector.shape_cast %59 : vector<2x128xf32> to vector<1x1x2x128xf32>
      %66 = arith.addf %64, %65 : vector<1x1x2x128xf32>
      %c0_32 = arith.constant 0 : index
      %c0_33 = arith.constant 0 : index
      %c0_34 = arith.constant 0 : index
      %c0_35 = arith.constant 0 : index
      %67 = vector.load %arg6[%c0_32, %c0_33, %c0_34, %c0_35] : memref<1x1x2x128xf32, #tpu.memory_space<vmem>>, vector<1x1x2x128xf32>
      tpu.vector_store %arg6[%c0_32, %c0_33, %c0_34, %c0_35], %66 {strides = array<i32>} : memref<1x1x2x128xf32, #tpu.memory_space<vmem>>, vector<1x1x2x128xf32>,
    } else {
    }
    return
  }
  func.func @transform_0(%arg0: i32, %arg1: i32, %arg2: i32) -> (i32, i32, i32, i32) {
    %c1_i32 = arith.constant 1 : i32
    %0 = arith.muli %arg1, %c1_i32 : i32
    %1 = arith.addi %0, %arg2 : i32
    %c0_i32 = arith.constant 0 : i32
    %2 = arith.minsi %1, %c0_i32 : i32
    %c0_i32_0 = arith.constant 0 : i32
    %c0_i32_1 = arith.constant 0 : i32
    %c0_i32_2 = arith.constant 0 : i32
    return %arg0, %c0_i32_0, %2, %c0_i32_1 : i32, i32, i32, i32
  }
  func.func @transform_1(%arg0: i32, %arg1: i32, %arg2: i32) -> (i32, i32, i32, i32) {
    %c1_i32 = arith.constant 1 : i32
    %0 = arith.muli %arg1, %c1_i32 : i32
    %1 = arith.addi %0, %arg2 : i32
    %c0_i32 = arith.constant 0 : i32
    %2 = arith.minsi %1, %c0_i32 : i32
    %c0_i32_0 = arith.constant 0 : i32
    %c0_i32_1 = arith.constant 0 : i32
    %c0_i32_2 = arith.constant 0 : i32
    return %arg0, %c0_i32_0, %2, %c0_i32_1 : i32, i32, i32, i32
  }
  func.func @transform_2(%arg0: i32, %arg1: i32, %arg2: i32) -> (i32, i32, i32, i32) {
    %c0_i32 = arith.constant 0 : i32
    %c0_i32_0 = arith.constant 0 : i32
    %c0_i32_1 = arith.constant 0 : i32
    return %arg0, %arg1, %c0_i32, %c0_i32_0 : i32, i32, i32, i32
  }
  func.func @transform_3(%arg0: i32, %arg1: i32, %arg2: i32) -> (i32, i32, i32, i32) {
    %c0_i32 = arith.constant 0 : i32
    %c0_i32_0 = arith.constant 0 : i32
    %c0_i32_1 = arith.constant 0 : i32
    return %arg0, %arg1, %c0_i32, %c0_i32_0 : i32, i32, i32, i32
  }
}

</mosaic_0001>

<llo_original>
// kernel: _base_losses.1
$region0: #{_base_losses.1}
  #allocation0 [shape = 'u32[]', space=smem, size = 0x4, offset = 0x4, fixed_abs, tag = 'smem constant byte address 0x4 - core index']
  #allocation1 [shape = 'u32[144,128]{1,0:T(1,128)}', space=vmem, size = 0x12000, scoped, tag = 'internal scratch']
  %s0 = inlined_call_operand.vmem [shape: f32[2,4,2,128], index: 0, kind: input, shape index: {}]
  %s1 = inlined_call_operand.vmem [shape: s32[2,1,2,128], index: 1, kind: input, shape index: {}]
  %s2 = inlined_call_operand.vmem [shape: f32[2,2,2,128], index: 2, kind: output, shape index: {0}]
  %s3 = inlined_call_operand.vmem [shape: f32[2,2,2,128], index: 3, kind: output, shape index: {1}]
  %4 = xla_tuple %s2, %s3
  %s5 = sld [smem:[#allocation0]]
  $region61: #{_base_losses.1} parent=0
    _
  %s7 = ssub.s32 1, %s5
  %s8 = scalar_select 0, %s7, %s5
  loop: start=0, step=1, limit=6
  $region2: #{_base_losses.1} parent=0 // loop_pre_header
    _
  $region3: #{_base_losses.1} parent=0 // loop_header
    %s10 = sphi 0, %s14
    %p11 = scmp.ge.s32.totalorder %s10, 6
    %s17 = sphi 0, %s36
    %s18 = sphi 0, %s32
    %s19 = sphi 0, %s28
    %s20 = sphi 0, %s17
    %s21 = sphi 0, %s18
    %s22 = sphi 0, %s19
    %s23 = sphi 0, %s20
    %s24 = sphi 0, %s21
    %s25 = sphi 0, %s22
    %s47 = sphi 0, %s49
    %s50 = sphi 0, %s47
    %s51 = sphi 0, %s50
    %s67 = sphi 0, %s51
    %s81 = sphi 0, %s83
    %s84 = sphi 0, %s81
    %s85 = sphi 0, %s84
    %s101 = sphi 0, %s85
    %s109 = sphi 0, %s111
    %s112 = sphi 0, %s109
    %s113 = sphi 0, %s112
    %s129 = sphi 0, %s113
    %s137 = sphi 0, %s139
    %s140 = sphi 0, %s137
    %s141 = sphi 0, %s140
    %s157 = sphi 0, %s141
  $region4: #{_base_losses.1} parent=0 // loop_header_branch
    %13 = sbr.rel (%p11) target = $region8
  $region5: #{_base_losses.1} parent=0 // loop_body
    %s15 = ssub.s32 %s10, 1
    %s16 = ssub.s32 %s10, 2
    %s26 = sadd.s32 1, %s19
    %p27 = scmp.ge.s32.totalorder %s26, 1
    %s28 = scalar_select %p27, 0, %s26
    %s29 = sadd.s32 1, %s18
    %s30 = scalar_select %p27, %s29, %s18
    %p31 = scmp.ge.s32.totalorder %s30, 2
    %s32 = scalar_select %p31, 0, %s30
    %s33 = sadd.s32 1, %s17
    %s34 = scalar_select %p31, %s33, %s17
    %p35 = scmp.ge.s32.totalorder %s34, 2
    %s36 = scalar_select %p35, 0, %s34
    %s37 = sadd.s32 %s18, %s19
    %p38 = scmp.lt.s32.totalorder %s37, 0
    %s39 = scalar_select %p38, %s37, 0
    %s40 = sadd.s32 %s32, %s28
    %p41 = scmp.lt.s32.totalorder %s40, 0
    %s42 = scalar_select %p41, %s40, 0
    %s43 = ssub.s32 %s17, %s36
    %s44 = ssub.s32 %s39, %s42
    %s45 = sor.u32 %s43, %s44
    %p46 = scmp.eq.s32.totalorder %s45, 0
    %s48 = sadd.s32 %s47, 1
    %s49 = scalar_select %p46, %s47, %s48
    %p52 = pneg %p46
    %p53 = scmp.eq.s32.totalorder %s10, 3
    %p54 = por %p52, %p53
    %p55 = scmp.ne.s32.totalorder %s47, %s50
    %p56 = scmp.eq.s32.totalorder %s10, 0
    %p57 = por %p55, %p56
    %p58 = scmp.ne.s32.totalorder %s47, %s50
    %p59 = scmp.eq.s32.totalorder %s15, 3
    %p60 = por %p58, %p59
    %p61 = scmp.ne.s32.totalorder %s50, %s51
    %p62 = scmp.eq.s32.totalorder %s15, 0
    %p63 = por %p61, %p62
    %p64 = scmp.ne.s32.totalorder %s50, %s51
    %p65 = scmp.eq.s32.totalorder %s16, 3
    %p66 = por %p64, %p65
    %p68 = scmp.ne.s32.totalorder %s51, %s67
    %p69 = scmp.eq.s32.totalorder %s16, 0
    %p70 = por %p68, %p69
    %s71 = sadd.s32 %s18, %s19
    %p72 = scmp.lt.s32.totalorder %s71, 0
    %s73 = scalar_select %p72, %s71, 0
    %s74 = sadd.s32 %s32, %s28
    %p75 = scmp.lt.s32.totalorder %s74, 0
    %s76 = scalar_select %p75, %s74, 0
    %s77 = ssub.s32 %s17, %s36
    %s78 = ssub.s32 %s73, %s76
    %s79 = sor.u32 %s77, %s78
    %p80 = scmp.eq.s32.totalorder %s79, 0
    %s82 = sadd.s32 %s81, 1
    %s83 = scalar_select %p80, %s81, %s82
    %p86 = pneg %p80
    %p87 = scmp.eq.s32.totalorder %s10, 3
    %p88 = por %p86, %p87
    %p89 = scmp.ne.s32.totalorder %s81, %s84
    %p90 = scmp.eq.s32.totalorder %s10, 0
    %p91 = por %p89, %p90
    %p92 = scmp.ne.s32.totalorder %s81, %s84
    %p93 = scmp.eq.s32.totalorder %s15, 3
    %p94 = por %p92, %p93
    %p95 = scmp.ne.s32.totalorder %s84, %s85
    %p96 = scmp.eq.s32.totalorder %s15, 0
    %p97 = por %p95, %p96
    %p98 = scmp.ne.s32.totalorder %s84, %s85
    %p99 = scmp.eq.s32.totalorder %s16, 3
    %p100 = por %p98, %p99
    %p102 = scmp.ne.s32.totalorder %s85, %s101
    %p103 = scmp.eq.s32.totalorder %s16, 0
    %p104 = por %p102, %p103
    %s105 = ssub.s32 %s17, %s36
    %s106 = ssub.s32 %s18, %s32
    %s107 = sor.u32 %s105, %s106
    %p108 = scmp.eq.s32.totalorder %s107, 0
    %s110 = sadd.s32 %s109, 1
    %s111 = scalar_select %p108, %s109, %s110
    %p114 = pneg %p108
    %p115 = scmp.eq.s32.totalorder %s10, 3
    %p116 = por %p114, %p115
    %p117 = scmp.ne.s32.totalorder %s109, %s112
    %p118 = scmp.eq.s32.totalorder %s10, 0
    %p119 = por %p117, %p118
    %p120 = scmp.ne.s32.totalorder %s109, %s112
    %p121 = scmp.eq.s32.totalorder %s15, 3
    %p122 = por %p120, %p121
    %p123 = scmp.ne.s32.totalorder %s112, %s113
    %p124 = scmp.eq.s32.totalorder %s15, 0
    %p125 = por %p123, %p124
    %p126 = scmp.ne.s32.totalorder %s112, %s113
    %p127 = scmp.eq.s32.totalorder %s16, 3
    %p128 = por %p126, %p127
    %p130 = scmp.ne.s32.totalorder %s113, %s129
    %p131 = scmp.eq.s32.totalorder %s16, 0
    %p132 = por %p130, %p131
    %s133 = ssub.s32 %s17, %s36
    %s134 = ssub.s32 %s18, %s32
    %s135 = sor.u32 %s133, %s134
    %p136 = scmp.eq.s32.totalorder %s135, 0
    %s138 = sadd.s32 %s137, 1
    %s139 = scalar_select %p136, %s137, %s138
    %p142 = pneg %p136
    %p143 = scmp.eq.s32.totalorder %s10, 3
    %p144 = por %p142, %p143
    %p145 = scmp.ne.s32.totalorder %s137, %s140
    %p146 = scmp.eq.s32.totalorder %s10, 0
    %p147 = por %p145, %p146
    %p148 = scmp.ne.s32.totalorder %s137, %s140
    %p149 = scmp.eq.s32.totalorder %s15, 3
    %p150 = por %p148, %p149
    %p151 = scmp.ne.s32.totalorder %s140, %s141
    %p152 = scmp.eq.s32.totalorder %s15, 0
    %p153 = por %p151, %p152
    %p154 = scmp.ne.s32.totalorder %s140, %s141
    %p155 = scmp.eq.s32.totalorder %s16, 3
    %p156 = por %p154, %p155
    %p158 = scmp.ne.s32.totalorder %s141, %s157
    %p159 = scmp.eq.s32.totalorder %s16, 0
    %p160 = por %p158, %p159
    %p161 = scmp.le.s32.totalorder 1, %s10
    %p162 = scmp.lt.s32.totalorder %s10, 5
    %p163 = pnand %p161, %p162
    %p164 = pneg %p163
    // Predicated region
    $region9: #{_base_losses.1} parent=5 // pred_check
      _
    $region10: #{_base_losses.1} parent=5 // pred_check_branch
      %166 = sbr.rel (%p163) target = $region12
    $region11: #{_base_losses.1} parent=5 // pred_region
      %s167 = ssub.s32 %s10, 1
    $region12: #{_base_losses.1} parent=5 // pred_fallthru
      _
    %p168 = scmp.lt.s32.totalorder %s10, 4
    // Predicated region
    $region13: #{_base_losses.1} parent=5 // pred_check
      %p169 = pneg %p168
    $region14: #{_base_losses.1} parent=5 // pred_check_branch
      %171 = sbr.rel (%p169) target = $region16
    $region15: #{_base_losses.1} parent=5 // pred_region
      // Predicated region
      $region17: #{_base_losses.1} parent=15 // pred_check
        %p172 = pneg %p57
      $region18: #{_base_losses.1} parent=15 // pred_check_branch
        %174 = sbr.rel (%p172) target = $region20
      $region19: #{_base_losses.1} parent=15 // pred_region
        %s175 = sadd.s32 %s18, %s19
        %p176 = scmp.lt.s32.totalorder %s175, 0
        %s177 = scalar_select %p176, %s175, 0
        %p178 = scmp.lt.s32.totalorder %s17, 1
        %s179 = scalar_select %p178, %s17, 1
        %p180 = scmp.lt.s32.totalorder %s177, 0
        %s181 = scalar_select %p180, %s177, 0
        %s182 = smul.addr %s179, 4
        %s183 = sadd.s32 %s181, %s182
        %s184 = smul.addr %s183, 2
        %s185 = scalar_lea.vmem %s0, %s184
        %s186 = sadd.s32 %s18, %s19
        %p187 = scmp.lt.s32.totalorder %s186, 0
        %s188 = scalar_select %p187, %s186, 0
      $region20: #{_base_losses.1} parent=15 // pred_fallthru
        _
      // Predicated region
      $region21: #{_base_losses.1} parent=15 // pred_check
        %p189 = pneg %p91
      $region22: #{_base_losses.1} parent=15 // pred_check_branch
        %191 = sbr.rel (%p189) target = $region24
      $region23: #{_base_losses.1} parent=15 // pred_region
        %s192 = sadd.s32 %s18, %s19
        %p193 = scmp.lt.s32.totalorder %s192, 0
        %s194 = scalar_select %p193, %s192, 0
        %p195 = scmp.lt.s32.totalorder %s17, 1
        %s196 = scalar_select %p195, %s17, 1
        %p197 = scmp.lt.s32.totalorder %s194, 0
        %s198 = scalar_select %p197, %s194, 0
        %s199 = sadd.s32 %s198, %s196
        %s200 = smul.addr %s199, 2
        %s201 = scalar_lea.vmem %s1, %s200
        %s202 = sadd.s32 %s18, %s19
        %p203 = scmp.lt.s32.totalorder %s202, 0
        %s204 = scalar_select %p203, %s202, 0
      $region24: #{_base_losses.1} parent=15 // pred_fallthru
        _
    $region16: #{_base_losses.1} parent=5 // pred_fallthru
      _
    %p205 = scmp.le.s32.totalorder 1, %s10
    %p206 = scmp.lt.s32.totalorder %s10, 5
    %p207 = pnand %p205, %p206
    %p208 = pneg %p207
    // Predicated region
    $region25: #{_base_losses.1} parent=5 // pred_check
      _
    $region26: #{_base_losses.1} parent=5 // pred_check_branch
      %210 = sbr.rel (%p207) target = $region28
    $region27: #{_base_losses.1} parent=5 // pred_region
      %s211 = ssub.s32 %s10, 1
      %s212 = sadd.s32 %s21, %s22
      %p213 = scmp.lt.s32.totalorder %s212, 0
      %s214 = scalar_select %p213, %s212, 0
      %p215 = scmp.lt.s32.totalorder %s20, 1
      %s216 = scalar_select %p215, %s20, 1
      %p217 = scmp.lt.s32.totalorder %s214, 0
      %s218 = scalar_select %p217, %s214, 0
      %s219 = smul.addr %s216, 4
      %s220 = sadd.s32 %s218, %s219
      %s221 = smul.addr %s220, 2
      %s222 = scalar_lea.vmem %s0, %s221
      %p223 = pneg %p63
      %p224 = pneg %p60
      %s225 = sadd.s32 %s21, %s22
      %p226 = scmp.lt.s32.totalorder %s225, 0
      %s227 = scalar_select %p226, %s225, 0
      %p228 = scmp.lt.s32.totalorder %s20, 1
      %s229 = scalar_select %p228, %s20, 1
      %p230 = scmp.lt.s32.totalorder %s227, 0
      %s231 = scalar_select %p230, %s227, 0
      %s232 = sadd.s32 %s231, %s229
      %s233 = smul.addr %s232, 2
      %s234 = scalar_lea.vmem %s1, %s233
      %p235 = pneg %p97
      %p236 = pneg %p94
      %p237 = pneg %p125
      %p238 = pneg %p122
      %p239 = scmp.lt.s32.totalorder %s20, 1
      %s240 = scalar_select %p239, %s20, 1
      %p241 = scmp.lt.s32.totalorder %s21, 1
      %s242 = scalar_select %p241, %s21, 1
      %s243 = smul.addr %s240, 2
      %s244 = sadd.s32 %s242, %s243
      %s245 = smul.addr %s244, 2
      %s246 = scalar_lea.vmem %s2, %s245
      %p247 = pneg %p153
      %p248 = pneg %p150
      %p249 = scmp.lt.s32.totalorder %s20, 1
      %s250 = scalar_select %p249, %s20, 1
      %p251 = scmp.lt.s32.totalorder %s21, 1
      %s252 = scalar_select %p251, %s21, 1
      %s253 = smul.addr %s250, 2
      %s254 = sadd.s32 %s252, %s253
      %s255 = smul.addr %s254, 2
      %s256 = scalar_lea.vmem %s3, %s255
      %s257 = sadd.s32 %s21, %s22
      %p258 = scmp.lt.s32.totalorder %s257, 0
      %s259 = scalar_select %p258, %s257, 0
      %p260 = scmp.lt.s32.totalorder %s20, 1
      %s261 = scalar_select %p260, %s20, 1
      %p262 = scmp.lt.s32.totalorder %s259, 0
      %s263 = scalar_select %p262, %s259, 0
      %s264 = smul.addr %s261, 4
      %s265 = sadd.s32 %s263, %s264
      %s266 = smul.addr %s265, 2
      %s267 = scalar_lea.vmem %s0, %s266
      %s268 = sadd.s32 %s21, %s22
      %p269 = scmp.lt.s32.totalorder %s268, 0
      %s270 = scalar_select %p269, %s268, 0
      %s271 = sadd.s32 %s21, %s22
      %p272 = scmp.lt.s32.totalorder %s271, 0
      %s273 = scalar_select %p272, %s271, 0
      %p274 = scmp.lt.s32.totalorder %s20, 1
      %s275 = scalar_select %p274, %s20, 1
      %p276 = scmp.lt.s32.totalorder %s273, 0
      %s277 = scalar_select %p276, %s273, 0
      %s278 = sadd.s32 %s277, %s275
      %s279 = smul.addr %s278, 2
      %s280 = scalar_lea.vmem %s1, %s279
      %s281 = sadd.s32 %s21, %s22
      %p282 = scmp.lt.s32.totalorder %s281, 0
      %s283 = scalar_select %p282, %s281, 0
      %p284 = scmp.lt.s32.totalorder %s20, 1
      %s285 = scalar_select %p284, %s20, 1
      %p286 = scmp.lt.s32.totalorder %s21, 1
      %s287 = scalar_select %p286, %s21, 1
      %s288 = smul.addr %s285, 2
      %s289 = sadd.s32 %s287, %s288
      %s290 = smul.addr %s289, 2
      %s291 = scalar_lea.vmem %s2, %s290
      %p292 = scmp.lt.s32.totalorder %s20, 1
      %s293 = scalar_select %p292, %s20, 1
      %p294 = scmp.lt.s32.totalorder %s21, 1
      %s295 = scalar_select %p294, %s21, 1
      %s296 = smul.addr %s293, 2
      %s297 = sadd.s32 %s295, %s296
      %s298 = smul.addr %s297, 2
      %s299 = scalar_lea.vmem %s3, %s298
      %p300 = scmp.eq.s32.totalorder %s22, 0
      // Predicated region
      $region29: #{_base_losses.1} parent=27 // pred_check
        %p301 = pneg %p300
      $region30: #{_base_losses.1} parent=27 // pred_check_branch
        %303 = sbr.rel (%p301) target = $region32
      $region31: #{_base_losses.1} parent=27 // pred_region
        %304 = vst [vmem:[%s291] sm:$0x3] 0.0
        %305 = vst [vmem:[%s299] sm:$0x3] 0.0
      $region32: #{_base_losses.1} parent=27 // pred_fallthru
        _
      %s306 = sadd.s32 %s21, %s22
      %s307 = sadd.s32 %s306, 1
      %s308 = smul.u32 %s307, 256
      %p309 = scmp.gt.s32.totalorder %s308, 256
      %p310 = scmp.le.s32.totalorder %s308, 256
      // Predicated region
      $region33: #{_base_losses.1} parent=27 // pred_check
        %p311 = pneg %p310
      $region34: #{_base_losses.1} parent=27 // pred_check_branch
        %313 = sbr.rel (%p311) target = $region36
      $region35: #{_base_losses.1} parent=27 // pred_region
        %v314 = vld [vmem:[%s267] sm:$0x3]
        %v315 = vld [vmem:[%s267 + $0x2] sm:$0x3]
        %v316 = vld [vmem:[%s267 + $0x4] sm:$0x3]
        %v317 = vld [vmem:[%s267 + $0x6] sm:$0x3]
        %v318 = vld [vmem:[%s280] sm:$0x3]
        %vm319 = vcmask 1041408
        %v320 = vsel %vm319, %v314, -inf
        %v321 = vsel %vm319, %v315, -inf
        %v322 = vsel %vm319, %v316, -inf
        %v323 = vsel %vm319, %v317, -inf
        %v324 = vmax.f32 %v320, %v321
        %v325 = vmax.f32 %v322, %v323
        %v326 = vmax.f32 %v324, %v325
        %v327 = vsub.f32 %v314, %v326
        %v328 = vsub.f32 %v315, %v326
        %v329 = vsub.f32 %v316, %v326
        %v330 = vsub.f32 %v317, %v326
        %v331 = vmul.f32 %v327, 1.442695
        %v332 = vpow.pop %v331
        %v333 = vmul.f32 %v328, 1.442695
        %v334 = vpow.pop %v333
        %v335 = vmul.f32 %v329, 1.442695
        %v336 = vpow.pop %v335
        %v337 = vmul.f32 %v330, 1.442695
        %v338 = vpow.pop %v337
        %v339 = vsel %vm319, %v332, 0.0
        %v340 = vsel %vm319, %v334, 0.0
        %v341 = vadd.f32 %v339, %v340
        %v342 = vsel %vm319, %v336, 0.0
        %v343 = vadd.f32 %v341, %v342
        %v344 = vsel %vm319, %v338, 0.0
        %v345 = vadd.f32 %v343, %v344
        %v346 = vlog2.pop %v345
        %v347 = vmul.f32 %v346, 0.6931472
        %v348 = vadd.f32 %v326, %v347
        %v349 = vrcp.pop %v345
        %v350 = vmul.f32 1.0, %v349
        %v351 = vmul.f32 %v332, %v350
        %v352 = vmul.f32 %v334, %v350
        %v353 = vmul.f32 %v336, %v350
        %v354 = vmul.f32 %v338, %v350
        %vm355 = vcmp.eq.s32.totalorder %v318, 0
        %vm356 = vcmp.eq.s32.totalorder %v318, 1
        %vm357 = vcmp.eq.s32.totalorder %v318, 2
        %vm358 = vcmp.eq.s32.totalorder %v318, 3
        %v359 = vsel %vm355, 1, 0
        %v360 = vsel %vm356, 1, 0
        %v361 = vsel %vm357, 1, 0
        %v362 = vsel %vm358, 1, 0
        %v363 = vcvt.s32.f32 %v359
        %v364 = vcvt.s32.f32 %v360
        %v365 = vcvt.s32.f32 %v361
        %v366 = vcvt.s32.f32 %v362
        %v367 = vmul.f32 %v363, %v314
        %v368 = vmul.f32 %v364, %v315
        %v369 = vmul.f32 %v365, %v316
        %v370 = vmul.f32 %v366, %v317
        %v371 = vsel %vm319, %v367, 0.0
        %v372 = vsel %vm319, %v368, 0.0
        %v373 = vadd.f32 %v371, %v372
        %v374 = vsel %vm319, %v369, 0.0
        %v375 = vadd.f32 %v373, %v374
        %v376 = vsel %vm319, %v370, 0.0
        %v377 = vadd.f32 %v375, %v376
        %v378 = vsub.f32 %v348, %v377
        %v379 = vsub.f32 %v351, %v363
        %v380 = vsub.f32 %v352, %v364
        %v381 = vsub.f32 %v353, %v365
        %v382 = vsub.f32 %v354, %v366
        %v383 = vmul.f32 %v379, %v379
        %v384 = vmul.f32 %v380, %v380
        %v385 = vmul.f32 %v381, %v381
        %v386 = vmul.f32 %v382, %v382
        %v387 = vsel %vm319, %v383, 0.0
        %v388 = vsel %vm319, %v384, 0.0
        %v389 = vadd.f32 %v387, %v388
        %v390 = vsel %vm319, %v385, 0.0
        %v391 = vadd.f32 %v389, %v390
        %v392 = vsel %vm319, %v386, 0.0
        %v393 = vadd.f32 %v391, %v392
        %v394 = vld [vmem:[%s291] sm:$0x3]
        %v395 = vadd.f32 %v394, %v378
        %396 = vst [vmem:[%s291] sm:$0x3] %v395
        %v397 = vld [vmem:[%s299] sm:$0x3]
        %v398 = vadd.f32 %v397, %v393
        %399 = vst [vmem:[%s299] sm:$0x3] %v398
      $region36: #{_base_losses.1} parent=27 // pred_fallthru
        _
      // Predicated region
      $region37: #{_base_losses.1} parent=27 // pred_check
        %p400 = pneg %p309
      $region38: #{_base_losses.1} parent=27 // pred_check_branch
        %402 = sbr.rel (%p400) target = $region40
      $region39: #{_base_losses.1} parent=27 // pred_region
        %v403 = vld [vmem:[%s267] sm:$0x3]
        %v404 = vld [vmem:[%s267 + $0x2] sm:$0x3]
        %v405 = vld [vmem:[%s267 + $0x4] sm:$0x3]
        %v406 = vld [vmem:[%s267 + $0x6] sm:$0x3]
        %v407 = vld [vmem:[%s280] sm:$0x3]
        %v408 = vlaneseq
        %v409 = vshrl.u32 %v408, 7
        %v410 = vlaneseq
        %v411 = vand.u32 %v410, 127
        %s412 = smul.u32 %s306, 2
        %v413 = vstv %s412
        %v414 = vadd.s32 %v413, %v409
        %v415 = vmul.u32 %v414, 128
        %v416 = vadd.s32 %v415, %v411
        %vm417 = vcmp.lt.s32.totalorder %v416, 256
        %v418 = vsel %vm417, 1, 0
        %vm419 = vcmp.eq.s32.totalorder %v418, 1
        %v420 = vsel %vm419, %v403, 0.0
        %v421 = vsel %vm419, %v404, 0.0
        %v422 = vsel %vm419, %v405, 0.0
        %v423 = vsel %vm419, %v406, 0.0
        %vm424 = vcmask 1041408
        %v425 = vsel %vm424, %v420, -inf
        %v426 = vsel %vm424, %v421, -inf
        %v427 = vsel %vm424, %v422, -inf
        %v428 = vsel %vm424, %v423, -inf
        %v429 = vmax.f32 %v425, %v426
        %v430 = vmax.f32 %v427, %v428
        %v431 = vmax.f32 %v429, %v430
        %v432 = vsub.f32 %v420, %v431
        %v433 = vsub.f32 %v421, %v431
        %v434 = vsub.f32 %v422, %v431
        %v435 = vsub.f32 %v423, %v431
        %v436 = vmul.f32 %v432, 1.442695
        %v437 = vpow.pop %v436
        %v438 = vmul.f32 %v433, 1.442695
        %v439 = vpow.pop %v438
        %v440 = vmul.f32 %v434, 1.442695
        %v441 = vpow.pop %v440
        %v442 = vmul.f32 %v435, 1.442695
        %v443 = vpow.pop %v442
        %v444 = vsel %vm424, %v437, 0.0
        %v445 = vsel %vm424, %v439, 0.0
        %v446 = vadd.f32 %v444, %v445
        %v447 = vsel %vm424, %v441, 0.0
        %v448 = vadd.f32 %v446, %v447
        %v449 = vsel %vm424, %v443, 0.0
        %v450 = vadd.f32 %v448, %v449
        %v451 = vlog2.pop %v450
        %v452 = vmul.f32 %v451, 0.6931472
        %v453 = vadd.f32 %v431, %v452
        %v454 = vrcp.pop %v450
        %v455 = vmul.f32 1.0, %v454
        %v456 = vmul.f32 %v437, %v455
        %v457 = vmul.f32 %v439, %v455
        %v458 = vmul.f32 %v441, %v455
        %v459 = vmul.f32 %v443, %v455
        %vm460 = vcmp.eq.s32.totalorder %v407, 0
        %vm461 = vcmp.eq.s32.totalorder %v407, 1
        %vm462 = vcmp.eq.s32.totalorder %v407, 2
        %vm463 = vcmp.eq.s32.totalorder %v407, 3
        %v464 = vsel %vm460, 1, 0
        %v465 = vsel %vm461, 1, 0
        %v466 = vsel %vm462, 1, 0
        %v467 = vsel %vm463, 1, 0
        %v468 = vcvt.s32.f32 %v464
        %v469 = vcvt.s32.f32 %v465
        %v470 = vcvt.s32.f32 %v466
        %v471 = vcvt.s32.f32 %v467
        %v472 = vmul.f32 %v468, %v420
        %v473 = vmul.f32 %v469, %v421
        %v474 = vmul.f32 %v470, %v422
        %v475 = vmul.f32 %v471, %v423
        %v476 = vsel %vm424, %v472, 0.0
        %v477 = vsel %vm424, %v473, 0.0
        %v478 = vadd.f32 %v476, %v477
        %v479 = vsel %vm424, %v474, 0.0
        %v480 = vadd.f32 %v478, %v479
        %v481 = vsel %vm424, %v475, 0.0
        %v482 = vadd.f32 %v480, %v481
        %v483 = vsub.f32 %v453, %v482
        %v484 = vsub.f32 %v456, %v468
        %v485 = vsub.f32 %v457, %v469
        %v486 = vsub.f32 %v458, %v470
        %v487 = vsub.f32 %v459, %v471
        %v488 = vmul.f32 %v484, %v484
        %v489 = vmul.f32 %v485, %v485
        %v490 = vmul.f32 %v486, %v486
        %v491 = vmul.f32 %v487, %v487
        %v492 = vsel %vm424, %v488, 0.0
        %v493 = vsel %vm424, %v489, 0.0
        %v494 = vadd.f32 %v492, %v493
        %v495 = vsel %vm424, %v490, 0.0
        %v496 = vadd.f32 %v494, %v495
        %v497 = vsel %vm424, %v491, 0.0
        %v498 = vadd.f32 %v496, %v497
        %v499 = vsel %vm417, %v483, 0.0
        %v500 = vsel %vm417, %v498, 0.0
        %v501 = vld [vmem:[%s291] sm:$0x3]
        %v502 = vadd.f32 %v501, %v499
        %503 = vst [vmem:[%s291] sm:$0x3] %v502
        %v504 = vld [vmem:[%s299] sm:$0x3]
        %v505 = vadd.f32 %v504, %v500
        %506 = vst [vmem:[%s299] sm:$0x3] %v505
      $region40: #{_base_losses.1} parent=27 // pred_fallthru
        _
      %p507 = scmp.lt.s32.totalorder %s20, 1
      %s508 = scalar_select %p507, %s20, 1
      %p509 = scmp.lt.s32.totalorder %s21, 1
      %s510 = scalar_select %p509, %s21, 1
      %s511 = smul.addr %s508, 2
      %s512 = sadd.s32 %s510, %s511
      %s513 = smul.addr %s512, 2
      %s514 = scalar_lea.vmem %s2, %s513
      %p515 = scmp.lt.s32.totalorder %s20, 1
      %s516 = scalar_select %p515, %s20, 1
      %p517 = scmp.lt.s32.totalorder %s21, 1
      %s518 = scalar_select %p517, %s21, 1
      %s519 = smul.addr %s516, 2
      %s520 = sadd.s32 %s518, %s519
      %s521 = smul.addr %s520, 2
      %s522 = scalar_lea.vmem %s3, %s521
      // Predicated region
      $region41: #{_base_losses.1} parent=27 // pred_check
        %p523 = pneg %p122
      $region42: #{_base_losses.1} parent=27 // pred_check_branch
        %525 = sbr.rel (%p523) target = $region44
      $region43: #{_base_losses.1} parent=27 // pred_region
        _
      $region44: #{_base_losses.1} parent=27 // pred_fallthru
        _
      // Predicated region
      $region45: #{_base_losses.1} parent=27 // pred_check
        %p526 = pneg %p150
      $region46: #{_base_losses.1} parent=27 // pred_check_branch
        %528 = sbr.rel (%p526) target = $region48
      $region47: #{_base_losses.1} parent=27 // pred_region
        _
      $region48: #{_base_losses.1} parent=27 // pred_fallthru
        _
    $region28: #{_base_losses.1} parent=5 // pred_fallthru
      _
    %p529 = scmp.le.s32.totalorder 2, %s10
    // Predicated region
    $region49: #{_base_losses.1} parent=5 // pred_check
      %p530 = pneg %p529
    $region50: #{_base_losses.1} parent=5 // pred_check_branch
      %532 = sbr.rel (%p530) target = $region52
    $region51: #{_base_losses.1} parent=5 // pred_region
      %s533 = ssub.s32 %s10, 2
      // Predicated region
      $region53: #{_base_losses.1} parent=51 // pred_check
        %p534 = pneg %p128
      $region54: #{_base_losses.1} parent=51 // pred_check_branch
        %536 = sbr.rel (%p534) target = $region56
      $region55: #{_base_losses.1} parent=51 // pred_region
        %p537 = scmp.lt.s32.totalorder %s23, 1
        %s538 = scalar_select %p537, %s23, 1
        %p539 = scmp.lt.s32.totalorder %s24, 1
        %s540 = scalar_select %p539, %s24, 1
        %s541 = smul.addr %s538, 2
        %s542 = sadd.s32 %s540, %s541
        %s543 = smul.addr %s542, 2
        %s544 = scalar_lea.vmem %s2, %s543
      $region56: #{_base_losses.1} parent=51 // pred_fallthru
        _
      // Predicated region
      $region57: #{_base_losses.1} parent=51 // pred_check
        %p545 = pneg %p156
      $region58: #{_base_losses.1} parent=51 // pred_check_branch
        %547 = sbr.rel (%p545) target = $region60
      $region59: #{_base_losses.1} parent=51 // pred_region
        %p548 = scmp.lt.s32.totalorder %s23, 1
        %s549 = scalar_select %p548, %s23, 1
        %p550 = scmp.lt.s32.totalorder %s24, 1
        %s551 = scalar_select %p550, %s24, 1
        %s552 = smul.addr %s549, 2
        %s553 = sadd.s32 %s551, %s552
        %s554 = smul.addr %s553, 2
        %s555 = scalar_lea.vmem %s3, %s554
      $region60: #{_base_losses.1} parent=51 // pred_fallthru
        _
    $region52: #{_base_losses.1} parent=5 // pred_fallthru
      _
  $region6: #{_base_losses.1} parent=0 // loop_footer
    %s14 = sadd.s32 1, %s10
  $region7: #{_base_losses.1} parent=0 // loop_footer_branch
    %9 = sbr.rel target = $region3
  $region8: #{_base_losses.1} parent=0 // loop_exit
    _

</llo_original>
